<compile_context>
chip_gen: v7x
topology: tpu7x:2x2x1
jax: 0.10.0
libtpu: 0.0.40
codegen_flags: <defaults>
</compile_context>

<pallas_src>
import jax
import jax.numpy as jnp
from jax.experimental import pallas as pl
from jax.experimental.pallas import tpu as pltpu


def _vit_headless_kernel(mp_ref, w_ref, b_ref, out_ref):
    # mp_ref:  (TB, P)  bf16  per-image mean patches (batch tile)
    # w_ref:   (P, F)   bf16  folded weight  (wp @ wfc), resident across grid
    # b_ref:   (1, F)   f32   folded bias    (bp @ wfc + bfc)
    # out_ref: (TB, F)  f32   L2-normalized features (F = 384 = 3*128 lanes)
    y = jnp.dot(mp_ref[...], w_ref[...],
                preferred_element_type=jnp.float32) + b_ref[...]        # (TB, F) f32
    # F.normalize: x / max(||x||_2, 1e-12) along last dim, implemented as
    # x * rsqrt(max(sum(x^2), 1e-24))  -> EUP rsqrt, no full-width divide.
    sumsq = jnp.sum(y * y, axis=-1, keepdims=True)
    inv = jax.lax.rsqrt(jnp.maximum(sumsq, 1e-24))
    out_ref[...] = (y * inv).astype(out_ref.dtype)


def fold_params(params, *, compute_dtype=jnp.bfloat16):
    """Fold linear stand-in backbone + fc into (W_comb, b_comb). Call ONCE."""
    wp, bp, wfc, bfc = params
    w_comb = (wp.astype(jnp.float32) @ wfc.astype(jnp.float32)).astype(compute_dtype)
    b_comb = (bp.astype(jnp.float32) @ wfc.astype(jnp.float32)
              + bfc.astype(jnp.float32)).astype(jnp.float32)            # (1, 384)
    return w_comb, b_comb


def vit_headless_forward(x, w_comb, b_comb, *, patch=4, tile_b=None,
                         compute_dtype=jnp.bfloat16):
    """x: NCHW image (B, C, H, W). Returns (B, 384) L2-normalized features."""
    B, C, H, W = x.shape
    nh, nw = H // patch, W // patch
    # Non-overlapping patches, channel-major within a patch (Conv2d ordering),
    # then mean over tokens of each image -> (B, P).  The mean commutes with
    # the linear stand-in backbone, so no pooling matrix / (B*N, P) matmul.
    p = x.reshape(B, C, nh, patch, nw, patch).transpose(0, 2, 4, 1, 3, 5)
    mean_patches = p.reshape(B, nh * nw, C * patch * patch).mean(axis=1)
    mean_patches = mean_patches.astype(compute_dtype)                   # bf16 DMA

    P, F_out = w_comb.shape

    # Batch tiling: one full-array block when B is small; otherwise 128-row
    # tiles (multiple of 8/16 sublanes) so the pipeline double-buffers the
    # batch stream, VMEM stays within the v7x 32 MiB scoped budget, and the
    # 'parallel' axis lets megacore / v7x's two TensorCores split the batch.
    if tile_b is None:
        tile_b = B if B <= 128 else 128
    grid_b = pl.cdiv(B, tile_b)

    cost = pl.CostEstimate(
        flops=2 * B * P * F_out,
        transcendentals=B,
        bytes_accessed=(mean_patches.size * mean_patches.dtype.itemsize
                        + w_comb.size * w_comb.dtype.itemsize
                        + b_comb.size * b_comb.dtype.itemsize
                        + B * F_out * 4),
    )

    return pl.pallas_call(
        _vit_headless_kernel,
        out_shape=jax.ShapeDtypeStruct((B, F_out), jnp.float32),
        grid=(grid_b,),
        in_specs=[
            pl.BlockSpec((tile_b, P), lambda i: (i, 0)),      # batch-tiled
            pl.BlockSpec((P, F_out), lambda i: (0, 0)),       # weight resident
            pl.BlockSpec((1, F_out), lambda i: (0, 0)),       # bias resident
        ],
        out_specs=pl.BlockSpec((tile_b, F_out), lambda i: (i, 0)),  # lane-dense (384)
        compiler_params=pltpu.CompilerParams(
            dimension_semantics=("parallel",)),
        cost_estimate=cost,
    )(mean_patches, w_comb, b_comb)


def init_params(key, *, in_ch=4, patch=4, n_features=32, out_dim=384):
    """Deterministic parameter init (xavier_normal for fc, zeros for fc bias)."""
    k_wp, k_bp, k_wfc = jax.random.split(key, 3)
    P = in_ch * patch * patch
    # Backbone stand-in (patch embedding).
    wp = jax.random.normal(k_wp, (P, n_features), jnp.float32) * 0.02
    bp = jnp.zeros((1, n_features), jnp.float32)
    # fc: nn.Linear(n_features, 384), xavier_normal_ weight, zero bias.
    xavier_std = (2.0 / (n_features + out_dim)) ** 0.5
    wfc = jax.random.normal(k_wfc, (n_features, out_dim), jnp.float32) * xavier_std
    bfc = jnp.zeros((1, out_dim), jnp.float32)
    return wp, bp, wfc, bfc


def reference_forward(x, params, *, patch=4):
    """Plain-JAX f32 reference mirroring the PyTorch semantics."""
    wp, bp, wfc, bfc = params
    B, C, H, W = x.shape
    nh, nw = H // patch, W // patch
    p = x.reshape(B, C, nh, patch, nw, patch).transpose(0, 2, 4, 1, 3, 5)
    p = p.reshape(B, nh * nw, C * patch * patch)
    emb = p @ wp + bp[None]                      # (B, N, D) patch embedding
    feat = emb.mean(axis=1)                      # backbone output (B, D)
    y = feat @ wfc + bfc                         # fc
    n = jnp.sqrt(jnp.sum(y * y, axis=-1, keepdims=True))
    return y / jnp.maximum(n, 1e-12)             # F.normalize


if __name__ == "__main__":
    key = jax.random.PRNGKey(0)
    k_x, k_p = jax.random.split(key)

    B, C, H, W = 2, 4, 16, 16
    x = jax.random.normal(k_x, (B, C, H, W), jnp.float32)
    params = init_params(k_p, in_ch=C, patch=4, n_features=32, out_dim=384)

    # Fold weights once (not per call); jit the forward so the patch
    # extraction / mean preamble fuses and isn't rebuilt eagerly each call.
    w_comb, b_comb = fold_params(params)
    fwd = jax.jit(vit_headless_forward)

    out = jax.block_until_ready(fwd(x, w_comb, b_comb))

    ref = reference_forward(x, params)
    assert out.shape == (B, 384)
    # bf16 MXU operands (f32 accumulate + f32 epilogue) -> looser tol than f32.
    assert jnp.allclose(out, ref, atol=5e-3, rtol=5e-3), "mismatch vs reference"

    print("KERNEL_OK")
</pallas_src>

<mosaic_0001>
module attributes {stable_mosaic.version = 11 : i64} {
  func.func @_vit_headless_kernel(%arg0: i32, %arg1: memref<2x64xbf16, #tpu.memory_space<vmem>>, %arg2: memref<64x384xbf16, #tpu.memory_space<vmem>>, %arg3: memref<1x384xf32, #tpu.memory_space<vmem>>, %arg4: memref<2x384xf32, #tpu.memory_space<vmem>>) attributes {dimension_semantics = [#tpu.dimension_semantics<parallel>], iteration_bounds = array<i64: 1>, scalar_prefetch = 0 : i64, scratch_operands = 0 : i64, tpu.core_type = #tpu.core_type<tc>, window_params = [{transform_indices = @transform_0, window_bounds = array<i64: 2, 64>}, {pipeline_mode = #tpu.pipeline_mode<synchronous>, transform_indices = @transform_1, window_bounds = array<i64: 64, 384>}, {pipeline_mode = #tpu.pipeline_mode<synchronous>, transform_indices = @transform_2, window_bounds = array<i64: 1, 384>}, {transform_indices = @transform_3, window_bounds = array<i64: 2, 384>}]} {
    %c0 = arith.constant 0 : index
    %c0_0 = arith.constant 0 : index
    %0 = vector.load %arg1[%c0, %c0_0] : memref<2x64xbf16, #tpu.memory_space<vmem>>, vector<2x64xbf16>
    %c0_1 = arith.constant 0 : index
    %c0_2 = arith.constant 0 : index
    %1 = vector.load %arg2[%c0_1, %c0_2] : memref<64x384xbf16, #tpu.memory_space<vmem>>, vector<64x384xbf16>
    %cst = arith.constant dense<0.000000e+00> : vector<2x384xf32>
    %2 = tpu.matmul %0, %1, %cst {dimension_numbers = #tpu.dot_dimension_numbers<[1], [0], [0], [1], [0, 0, 1, 1], [], []>} : vector<2x64xbf16>, vector<64x384xbf16>, vector<2x384xf32> -> vector<2x384xf32>
    %c0_3 = arith.constant 0 : index
    %c0_4 = arith.constant 0 : index
    %3 = vector.load %arg3[%c0_3, %c0_4] : memref<1x384xf32, #tpu.memory_space<vmem>>, vector<1x384xf32>
    %4 = vector.broadcast %3 : vector<1x384xf32> to vector<2x384xf32>
    %5 = arith.addf %2, %4 : vector<2x384xf32>
    %6 = arith.mulf %5, %5 : vector<2x384xf32>
    %cst_5 = arith.constant dense<0.000000e+00> : vector<2xf32>
    %7 = vector.multi_reduction <add>, %6, %cst_5 [1] : vector<2x384xf32> to vector<2xf32>
    %8 = vector.shape_cast %7 : vector<2xf32> to vector<2x1xf32>
    %cst_6 = arith.constant 1.000000e-24 : f32
    %9 = vector.broadcast %cst_6 : f32 to vector<2x1xf32>
    %10 = arith.maximumf %8, %9 : vector<2x1xf32>
    %11 = math.rsqrt %10 : vector<2x1xf32>
    %12 = vector.broadcast %11 : vector<2x1xf32> to vector<2x384xf32>
    %13 = arith.mulf %5, %12 : vector<2x384xf32>
    %c0_7 = arith.constant 0 : index
    %c0_8 = arith.constant 0 : index
    %14 = vector.load %arg4[%c0_7, %c0_8] : memref<2x384xf32, #tpu.memory_space<vmem>>, vector<2x384xf32>
    tpu.vector_store %arg4[%c0_7, %c0_8], %13 {strides = array<i32>} : memref<2x384xf32, #tpu.memory_space<vmem>>, vector<2x384xf32>,
    return
  }
  func.func @transform_0(%arg0: i32) -> (i32, i32) {
    %c0_i32 = arith.constant 0 : i32
    %c0_i32_0 = arith.constant 0 : i32
    return %arg0, %c0_i32 : i32, i32
  }
  func.func @transform_1(%arg0: i32) -> (i32, i32) {
    %c0_i32 = arith.constant 0 : i32
    %c0_i32_0 = arith.constant 0 : i32
    %c0_i32_1 = arith.constant 0 : i32
    return %c0_i32, %c0_i32_0 : i32, i32
  }
  func.func @transform_2(%arg0: i32) -> (i32, i32) {
    %c0_i32 = arith.constant 0 : i32
    %c0_i32_0 = arith.constant 0 : i32
    %c0_i32_1 = arith.constant 0 : i32
    return %c0_i32, %c0_i32_0 : i32, i32
  }
  func.func @transform_3(%arg0: i32) -> (i32, i32) {
    %c0_i32 = arith.constant 0 : i32
    %c0_i32_0 = arith.constant 0 : i32
    return %arg0, %c0_i32 : i32, i32
  }
}

</mosaic_0001>

<llo_original>
// kernel: vit_headless_forward.1
$region0: #{vit_headless_forward.1}
  #allocation0 [shape = 'u32[]', space=smem, size = 0x4, offset = 0x4, fixed_abs, tag = 'smem constant byte address 0x4 - core index']
  #allocation1 [shape = 'u32[144,128]{1,0:T(1,128)}', space=vmem, size = 0x12000, scoped, tag = 'internal scratch']
  %s0 = inlined_call_operand.vmem [shape: bf16[2,64], index: 0, kind: input, shape index: {}]
  %s1 = inlined_call_operand.vmem [shape: bf16[64,384], index: 1, kind: input, shape index: {}]
  %s2 = inlined_call_operand.vmem [shape: f32[1,384], index: 2, kind: input, shape index: {}]
  %s3 = inlined_call_operand.hbm [shape: f32[2,384], index: 3, kind: output, shape index: {}]
  %s4 = sld [smem:[#allocation0]]
  $region22: #{vit_headless_forward.1} parent=0
    _
  %s6 = ssub.s32 1, %s4
  %s7 = scalar_select 0, %s6, %s4
  $region1: #{vit_headless_forward.1} parent=0
    #allocation2 [shape = 'u8[3072]{0}', space=vmem, size = 0xc00, scoped, tag = 'output window, operand 0, single buffered']
    #allocation3 [shape = 's32[1]{0}', space=sflag, size = 0x4, scoped, tag = 'scoped memory for vit_headless_forward.1']
    %8 = vsyncpa [#allocation3], 0
    // Predicated region
    $region2: #{vit_headless_forward.1} parent=1 // pred_check
      _
    $region3: #{vit_headless_forward.1} parent=1 // pred_check_branch
      %10 = sbr.rel (0) target = $region5
    $region4: #{vit_headless_forward.1} parent=1 // pred_region
      _
    $region5: #{vit_headless_forward.1} parent=1 // pred_fallthru
      _
    // Predicated region
    $region6: #{vit_headless_forward.1} parent=1 // pred_check
      _
    $region7: #{vit_headless_forward.1} parent=1 // pred_check_branch
      %12 = sbr.rel (0) target = $region9
    $region8: #{vit_headless_forward.1} parent=1 // pred_region
      _
    $region9: #{vit_headless_forward.1} parent=1 // pred_fallthru
      _
    // Predicated region
    $region10: #{vit_headless_forward.1} parent=1 // pred_check
      _
    $region11: #{vit_headless_forward.1} parent=1 // pred_check_branch
      %14 = sbr.rel (0) target = $region13
    $region12: #{vit_headless_forward.1} parent=1 // pred_region
      _
    $region13: #{vit_headless_forward.1} parent=1 // pred_fallthru
      _
    %v16 = vld [vmem:[%s0] sm:$0x1]
    %v17 = vld [vmem:[%s1] sm:$0xff]
    %v18 = vld [vmem:[%s1 + $0x8] sm:$0xf]
    %v19 = vld [vmem:[%s1 + $0xc] sm:$0xff]
    %v20 = vld [vmem:[%s1 + $0x14] sm:$0xf]
    %v21 = vld [vmem:[%s1 + $0x18] sm:$0xff]
    %v22 = vld [vmem:[%s1 + $0x20] sm:$0xf]
    %v23 = vld [vmem:[%s1 + $0x24] sm:$0xff]
    %v24 = vld [vmem:[%s1 + $0x2c] sm:$0xf]
    %v25 = vld [vmem:[%s1 + $0x30] sm:$0xff]
    %v26 = vld [vmem:[%s1 + $0x38] sm:$0xf]
    %v27 = vld [vmem:[%s1 + $0x3c] sm:$0xff]
    %v28 = vld [vmem:[%s1 + $0x44] sm:$0xf]
    %v29 = vld [vmem:[%s1 + $0x48] sm:$0xff]
    %v30 = vld [vmem:[%s1 + $0x50] sm:$0xf]
    %v31 = vld [vmem:[%s1 + $0x54] sm:$0xff]
    %v32 = vld [vmem:[%s1 + $0x5c] sm:$0xf]
    %v33 = vld [vmem:[%s2] sm:$0x7]
    %v35 = vlaneseq
    %v36 = vshrl.u32 %v35, 7
    %v37 = vsub.s32 0, %v36
    %v38 = vrot.slane %v33, %v37
    %v39 = vlaneseq
    %v40 = vshrl.u32 %v39, 7
    %v41 = vsub.s32 1, %v40
    %v42 = vrot.slane %v33, %v41
    %v43 = vlaneseq
    %v44 = vshrl.u32 %v43, 7
    %v45 = vsub.s32 2, %v44
    %v46 = vrot.slane %v33, %v45
    %v66 = vunpack.c.l.b16 %v17
    %v67 = vunpack.c.h.b16 %v17
    %v68 = vunpack.c.l.b16 %v18
    %v69 = vunpack.c.l.b16 %v19
    %v70 = vunpack.c.h.b16 %v19
    %v71 = vunpack.c.l.b16 %v20
    %v72 = vunpack.c.l.b16 %v21
    %v73 = vunpack.c.h.b16 %v21
    %v74 = vunpack.c.l.b16 %v22
    %v75 = vunpack.c.l.b16 %v23
    %v76 = vunpack.c.h.b16 %v23
    %v77 = vunpack.c.l.b16 %v24
    %v78 = vunpack.c.l.b16 %v25
    %v79 = vunpack.c.h.b16 %v25
    %v80 = vunpack.c.l.b16 %v26
    %v81 = vunpack.c.l.b16 %v27
    %v82 = vunpack.c.h.b16 %v27
    %v83 = vunpack.c.l.b16 %v28
    %v84 = vunpack.c.l.b16 %v29
    %v85 = vunpack.c.h.b16 %v29
    %v86 = vunpack.c.l.b16 %v30
    %v87 = vunpack.c.l.b16 %v31
    %v88 = vunpack.c.h.b16 %v31
    %v89 = vunpack.c.l.b16 %v32
    %v90 = vpack.c.b16 %v69, %v66
    %v91 = vpack.c.b16 %v70, %v67
    %v92 = vpack.c.b16 %v71, %v68
    %v93 = vpack.c.b16 %v75, %v72
    %v94 = vpack.c.b16 %v76, %v73
    %v95 = vpack.c.b16 %v77, %v74
    %v96 = vpack.c.b16 %v81, %v78
    %v97 = vpack.c.b16 %v82, %v79
    %v98 = vpack.c.b16 %v83, %v80
    %v99 = vpack.c.b16 %v87, %v84
    %v100 = vpack.c.b16 %v88, %v85
    %v101 = vpack.c.b16 %v89, %v86
    %vm114 = vcmask 523264
    %v116 = vsel %vm114, %v16, 0
    %118 = vmatprep.subr.bf16.mxu0 %v91
    %119 = vmatpush1.bf16.msra.mxu0 %v90
    %120 = vmatprep.subr.bf16.mxu0 %v94
    %121 = vmatpush1.bf16.msra.mxu0 %v93
    %122 = vmatprep.subr.bf16.mxu0 %v97
    %123 = vmatpush1.bf16.msra.mxu0 %v96
    %124 = vmatprep.subr.bf16.mxu0 %v100
    %125 = vmatpush1.bf16.msra.mxu0 %v99
    %126 = vmatprep.subr.bf16.mxu0 0
    %127 = vmatpush1.bf16.msra.mxu0 0
    %128 = vmatprep.subr.bf16.mxu0 0
    %129 = vmatpush1.bf16.msra.mxu0 0
    %130 = vmatprep.subr.bf16.mxu0 0
    %131 = vmatpush1.bf16.msra.mxu0 0
    %132 = vmatprep.subr.bf16.mxu0 0
    %133 = vmatpush1.bf16.msra.mxu0 0
    %134 = vmatprep.subr.bf16.mxu0 0
    %135 = vmatpush1.bf16.msra.mxu0 0
    %136 = vmatprep.subr.bf16.mxu0 0
    %137 = vmatpush1.bf16.msra.mxu0 0
    %138 = vmatprep.subr.bf16.mxu0 0
    %139 = vmatpush1.bf16.msra.mxu0 0
    %140 = vmatprep.subr.bf16.mxu0 0
    %141 = vmatpush1.bf16.msra.mxu0 0
    %142 = vmatprep.subr.bf16.mxu0 0
    %143 = vmatpush1.bf16.msra.mxu0 0
    %144 = vmatprep.subr.bf16.mxu0 0
    %145 = vmatpush1.bf16.msra.mxu0 0
    %146 = vmatprep.subr.bf16.mxu0 0
    %147 = vmatpush1.bf16.msra.mxu0 0
    %148 = vmatprep.subr.bf16.mxu0 0
    %149 = vmatpush1.bf16.msra.mxu0 0
    %150 = vmatprep.mubr.bf16.mxu0 0
    %151 = vmatmul.mubr.bf16.gmra.mrb[0].mxu0 %v116
    %v152 = vpop.f32.mrb[0].mxu0
    %v153 = vadd.f32 %v38, %v152
    %v154 = vpop.f32.mrb[0].mxu0
    %v155 = vadd.f32 %v42, %v154
    %v156 = vpop.f32.mrb[0].mxu0
    %v157 = vpop.f32.mrb[0].mxu0
    %158 = vdwg.mxu0
    %159 = vmatprep.subr.bf16.mxu0 0
    %160 = vmatpush1.bf16.msra.mxu0 %v92
    %161 = vmatprep.subr.bf16.mxu0 0
    %162 = vmatpush1.bf16.msra.mxu0 %v95
    %163 = vmatprep.subr.bf16.mxu0 0
    %164 = vmatpush1.bf16.msra.mxu0 %v98
    %165 = vmatprep.subr.bf16.mxu0 0
    %166 = vmatpush1.bf16.msra.mxu0 %v101
    %167 = vmatprep.subr.bf16.mxu0 0
    %168 = vmatpush1.bf16.msra.mxu0 0
    %169 = vmatprep.subr.bf16.mxu0 0
    %170 = vmatpush1.bf16.msra.mxu0 0
    %171 = vmatprep.subr.bf16.mxu0 0
    %172 = vmatpush1.bf16.msra.mxu0 0
    %173 = vmatprep.subr.bf16.mxu0 0
    %174 = vmatpush1.bf16.msra.mxu0 0
    %175 = vmatprep.subr.bf16.mxu0 0
    %176 = vmatpush1.bf16.msra.mxu0 0
    %177 = vmatprep.subr.bf16.mxu0 0
    %178 = vmatpush1.bf16.msra.mxu0 0
    %179 = vmatprep.subr.bf16.mxu0 0
    %180 = vmatpush1.bf16.msra.mxu0 0
    %181 = vmatprep.subr.bf16.mxu0 0
    %182 = vmatpush1.bf16.msra.mxu0 0
    %183 = vmatprep.subr.bf16.mxu0 0
    %184 = vmatpush1.bf16.msra.mxu0 0
    %185 = vmatprep.subr.bf16.mxu0 0
    %186 = vmatpush1.bf16.msra.mxu0 0
    %187 = vmatprep.subr.bf16.mxu0 0
    %188 = vmatpush1.bf16.msra.mxu0 0
    %189 = vmatprep.subr.bf16.mxu0 0
    %190 = vmatpush1.bf16.msra.mxu0 0
    %191 = vmatprep.mubr.bf16.mxu0 0
    %192 = vmatmul.mubr.bf16.gmra.mrb[0].mxu0 %v116
    %v193 = vpop.f32.mrb[0].mxu0
    %v194 = vadd.f32 %v46, %v193
    %v195 = vpop.f32.mrb[0].mxu0
    %v196 = vpop.f32.mrb[0].mxu0
    %v197 = vpop.f32.mrb[0].mxu0
    %198 = vdwg.mxu0
    %v199 = vmul.f32 %v153, %v153
    %v200 = vmul.f32 %v155, %v155
    %v201 = vmul.f32 %v194, %v194
    %vm202 = vcmask 1041408
    %v203 = vsel %vm202, %v199, 0.0
    %v204 = vsel %vm202, %v200, 0.0
    %v205 = vadd.f32 %v203, %v204
    %v206 = vsel %vm202, %v201, 0.0
    %v207 = vadd.f32 %v205, %v206
    %208 = vadd.xlane.f32.xlu0 %v207
    %v209 = vpop.xlane.xlu0 %208
    %v210 = vmax.f32 %v209, 1e-24
    %v211 = vrsqrt.pop %v210
    %v212 = vmul.f32 %v153, %v211
    %v213 = vmul.f32 %v155, %v211
    %v214 = vmul.f32 %v194, %v211
    %v218 = vcombine.low %v212, %v213
    %v220 = vunpack.c.l.s4 1983009808
    %v221 = vunpack.c.0.s8 %v220
    %v222 = vlaneseq
    %v223 = vshrl.u32 %v222, 7
    %v224 = vsub.s32 %v221, %v223
    %v225 = vrot.slane %v218, %v224
    %v227 = vunpack.c.l.s4 1983009808
    %v228 = vunpack.c.0.s8 %v227
    %v229 = vlaneseq
    %v230 = vshrl.u32 %v229, 7
    %v231 = vsub.s32 %v228, %v230
    %v232 = vrot.slane %v214, %v231
    %v233 = vcombine.low %v225, %v232
    %235 = vst [vmem:[#allocation2] sm:$0x3f] %v233
    // Predicated region
    $region14: #{vit_headless_forward.1} parent=1 // pred_check
      _
    $region15: #{vit_headless_forward.1} parent=1 // pred_check_branch
      %237 = sbr.rel (0) target = $region17
    $region16: #{vit_headless_forward.1} parent=1 // pred_region
      %s239 = ssub.s32 96, 96
      %240 = vsyncadd [#allocation3], %s239
      %s242 = sshll.u32 [#allocation2], 4
      %s243 = int_to_ptr.vmem [resolvable:$true] %s242
      %245 = dma.vmem_to_hbm [thread:$0]  %s243, 96, %s3, [#allocation3]
    $region17: #{vit_headless_forward.1} parent=1 // pred_fallthru
      _
    // Predicated region
    $region18: #{vit_headless_forward.1} parent=1 // pred_check
      _
    $region19: #{vit_headless_forward.1} parent=1 // pred_check_branch
      %247 = sbr.rel (0) target = $region21
    $region20: #{vit_headless_forward.1} parent=1 // pred_region
      %248 = dma.done [#allocation3], 96
    $region21: #{vit_headless_forward.1} parent=1 // pred_fallthru
      _
    %249 = vsyncpa [#allocation3], 1

</llo_original>
